<compile_context>
chip_gen: v7x
topology: tpu7x:2x2x1
jax: 0.10.0
libtpu: 0.0.40
codegen_flags: <defaults>
</compile_context>

<pallas_src>
import jax
import jax.numpy as jnp
from jax.experimental import pallas as pl
from jax.experimental.pallas import tpu as pltpu

EMBED_DIM = 384
H1 = 256
H2 = 128
OUT = 1
W3_ROWS = 8  # fc3 weight replicated across 8 sublanes -> full-tile MXU LHS


def _round_up(x, m):
    return (x + m - 1) // m * m


def siamese_head_kernel(e1_ref, e2_ref, w1a_ref, w1b_ref, w2_ref, w3r_ref,
                        b1_ref, b2_ref, b3_ref, o_ref):
    # Cast activations to bf16 on the VPU (HBM stream stays f32; no wrapper
    # cast pass).
    e1 = e1_ref[...].astype(jnp.bfloat16)
    e2 = e2_ref[...].astype(jnp.bfloat16)

    # fc1 split across the two embeddings (the concat never materializes).
    h1 = jnp.dot(e1, w1a_ref[...], preferred_element_type=jnp.float32)
    h1 = h1 + jnp.dot(e2, w1b_ref[...], preferred_element_type=jnp.float32)
    h1 = jnp.maximum(h1 + b1_ref[...], 0.0)                       # (tb, 256)

    # fc2 + ReLU (bf16 MXU feed, f32 accumulate).
    h2 = jnp.dot(h1.astype(jnp.bfloat16), w2_ref[...],
                 preferred_element_type=jnp.float32)
    h2 = jnp.maximum(h2 + b2_ref[...], 0.0)                       # (tb, 128)

    # fc3 in "q @ k.T" orientation: contract the 128-wide hidden dim of both
    # operands so the result is lane-dense along the batch.  The fc3 weight is
    # pre-replicated to 8 sublanes (full-tile LHS); only row 0 is used.
    w3 = w3r_ref[...].astype(jnp.float32)                         # (8, 128)
    logits8 = jax.lax.dot_general(
        w3, h2, dimension_numbers=(((1,), (1,)), ((), ())),
        preferred_element_type=jnp.float32)                       # (8, tb)
    logits = logits8[0:1, :] + b3_ref[0, 0]                       # (1, tb)

    # sigmoid: exp on the EUP, approximate reciprocal also on the EUP.
    o_ref[...] = pl.reciprocal(1.0 + jnp.exp(-logits), approx=True)


def siamese_forward(e1, e2, params, *, tb=None):
    """e1, e2: (B, EMBED_DIM) float32 embeddings. Returns (B, 1) scores."""
    w1a, w1b, w2, w3r, b1, b2, b3 = params
    B = e1.shape[0]

    if tb is None:
        if B <= 256:
            # Single full-array block: no padding, no partial blocks.
            tb = B
        else:
            # >=2 grid steps (feeds both v7x TensorCores); tile capped at 1024
            # rows so double-buffered f32 activation tiles + resident bf16
            # weights stay under the 16 MiB v5e scoped-VMEM default
            # (~11 MiB peak), far under v6e/v7x defaults.
            tb = min(1024, _round_up(pl.cdiv(B, 2), 128))
    nb = pl.cdiv(B, tb)  # ragged tail handled by Pallas partial-block masking

    batch = lambda i: (i, 0)     # activation tiles walk the batch (sublane) axis
    const = lambda i: (0, 0)     # weights & biases stay resident in VMEM
    out_cols = lambda i: (0, i)  # packed scores walk the lane axis

    out = pl.pallas_call(
        siamese_head_kernel,
        out_shape=jax.ShapeDtypeStruct((1, nb * tb), jnp.float32),
        grid=(nb,),
        in_specs=[
            pl.BlockSpec((tb, EMBED_DIM), batch),    # e1 (f32)
            pl.BlockSpec((tb, EMBED_DIM), batch),    # e2 (f32)
            pl.BlockSpec((EMBED_DIM, H1), const),    # w1a (bf16)
            pl.BlockSpec((EMBED_DIM, H1), const),    # w1b (bf16)
            pl.BlockSpec((H1, H2), const),           # w2  (bf16)
            pl.BlockSpec((W3_ROWS, H2), const),      # w3 replicated rows (bf16)
            pl.BlockSpec((1, H1), const),            # b1  (f32)
            pl.BlockSpec((1, H2), const),            # b2  (f32)
            pl.BlockSpec(memory_space=pltpu.MemorySpace.SMEM),  # b3 scalar
        ],
        out_specs=pl.BlockSpec((1, tb), out_cols),
        compiler_params=pltpu.CompilerParams(
            dimension_semantics=("parallel",)),
    )(e1, e2, w1a, w1b, w2, w3r, b1, b2, b3)

    # Tiny (1, nb*tb) array: slicing / reshaping it back to (B, 1) is ~free.
    return out[0, :B].reshape(B, OUT)


def init_params(key):
    """Deterministic synthetic parameters matching nn.Linear shapes.

    Weights stored (in_features, out_features) in bf16; fc1's weight is
    pre-split into the e1 / e2 halves; fc3's weight is replicated across 8
    sublanes so the kernel feeds the MXU a full-tile LHS. Biases stay f32.
    """
    k1, k2, k3, k4, k5, k6 = jax.random.split(key, 6)
    w1 = jax.random.normal(k1, (2 * EMBED_DIM, H1), jnp.float32) * 0.02
    w2 = jax.random.normal(k2, (H1, H2), jnp.float32) * 0.02
    w3 = jax.random.normal(k3, (H2, OUT), jnp.float32) * 0.02
    b1 = jax.random.normal(k4, (1, H1), jnp.float32) * 0.01
    b2 = jax.random.normal(k5, (1, H2), jnp.float32) * 0.01
    b3 = jax.random.normal(k6, (1, 1), jnp.float32) * 0.01

    w1a = w1[:EMBED_DIM].astype(jnp.bfloat16)
    w1b = w1[EMBED_DIM:].astype(jnp.bfloat16)
    w2b = w2.astype(jnp.bfloat16)
    w3r = jnp.broadcast_to(w3.reshape(1, H2), (W3_ROWS, H2)).astype(jnp.bfloat16)
    return w1a, w1b, w2b, w3r, b1, b2, b3


def reference_forward(e1, e2, params):
    """Pure-JAX reference mirroring the kernel math (bf16 weights, f32 acc)."""
    w1a, w1b, w2, w3r, b1, b2, b3 = params
    f32 = jnp.float32
    hp = jax.lax.Precision.HIGHEST
    x1 = e1.astype(jnp.bfloat16).astype(f32)
    x2 = e2.astype(jnp.bfloat16).astype(f32)
    h1 = (jnp.dot(x1, w1a.astype(f32), precision=hp)
          + jnp.dot(x2, w1b.astype(f32), precision=hp) + b1)
    h1 = jnp.maximum(h1, 0.0).astype(jnp.bfloat16).astype(f32)
    h2 = jnp.maximum(jnp.dot(h1, w2.astype(f32), precision=hp) + b2, 0.0)
    w3_row = w3r[0:1].astype(f32)                                  # (1, 128)
    logits = jnp.dot(h2, w3_row.T, precision=hp) + b3[0, 0]        # (B, 1)
    return jax.nn.sigmoid(logits)


if __name__ == "__main__":
    key = jax.random.PRNGKey(0)
    kp, ke1, ke2 = jax.random.split(key, 3)

    params = init_params(kp)

    B = 8  # small batch
    # Synthetic "sentence embeddings" standing in for SentenceTransformer.encode
    e1 = jax.random.normal(ke1, (B, EMBED_DIM), jnp.float32)
    e2 = jax.random.normal(ke2, (B, EMBED_DIM), jnp.float32)

    out = siamese_forward(e1, e2, params)
    out = jax.block_until_ready(out)

    ref = reference_forward(e1, e2, params)
    assert out.shape == (B, OUT)
    # approx reciprocal in the sigmoid contributes ~1e-3-level relative error.
    assert jnp.allclose(out, ref, atol=2e-3), "mismatch vs reference"

    print("KERNEL_OK")
</pallas_src>

<mosaic_0001>
module attributes {stable_mosaic.version = 11 : i64} {
  func.func @siamese_head_kernel(%arg0: i32, %arg1: memref<8x384xf32, #tpu.memory_space<vmem>>, %arg2: memref<8x384xf32, #tpu.memory_space<vmem>>, %arg3: memref<384x256xbf16, #tpu.memory_space<vmem>>, %arg4: memref<384x256xbf16, #tpu.memory_space<vmem>>, %arg5: memref<256x128xbf16, #tpu.memory_space<vmem>>, %arg6: memref<8x128xbf16, #tpu.memory_space<vmem>>, %arg7: memref<1x256xf32, #tpu.memory_space<vmem>>, %arg8: memref<1x128xf32, #tpu.memory_space<vmem>>, %arg9: memref<1x1xf32, #tpu.memory_space<smem>>, %arg10: memref<1x8xf32, #tpu.memory_space<vmem>>) attributes {dimension_semantics = [#tpu.dimension_semantics<parallel>], iteration_bounds = array<i64: 1>, scalar_prefetch = 0 : i64, scratch_operands = 0 : i64, tpu.core_type = #tpu.core_type<tc>, window_params = [{transform_indices = @transform_0, window_bounds = array<i64: 8, 384>}, {transform_indices = @transform_1, window_bounds = array<i64: 8, 384>}, {pipeline_mode = #tpu.pipeline_mode<synchronous>, transform_indices = @transform_2, window_bounds = array<i64: 384, 256>}, {pipeline_mode = #tpu.pipeline_mode<synchronous>, transform_indices = @transform_3, window_bounds = array<i64: 384, 256>}, {pipeline_mode = #tpu.pipeline_mode<synchronous>, transform_indices = @transform_4, window_bounds = array<i64: 256, 128>}, {pipeline_mode = #tpu.pipeline_mode<synchronous>, transform_indices = @transform_5, window_bounds = array<i64: 8, 128>}, {pipeline_mode = #tpu.pipeline_mode<synchronous>, transform_indices = @transform_6, window_bounds = array<i64: 1, 256>}, {pipeline_mode = #tpu.pipeline_mode<synchronous>, transform_indices = @transform_7, window_bounds = array<i64: 1, 128>}, {transform_indices = @transform_8, window_bounds = array<i64: 1, 1>}, {transform_indices = @transform_9, window_bounds = array<i64: 1, 8>}]} {
    %c0 = arith.constant 0 : index
    %c0_0 = arith.constant 0 : index
    %0 = vector.load %arg1[%c0, %c0_0] : memref<8x384xf32, #tpu.memory_space<vmem>>, vector<8x384xf32>
    %1 = arith.truncf %0 : vector<8x384xf32> to vector<8x384xbf16>
    %c0_1 = arith.constant 0 : index
    %c0_2 = arith.constant 0 : index
    %2 = vector.load %arg2[%c0_1, %c0_2] : memref<8x384xf32, #tpu.memory_space<vmem>>, vector<8x384xf32>
    %3 = arith.truncf %2 : vector<8x384xf32> to vector<8x384xbf16>
    %c0_3 = arith.constant 0 : index
    %c0_4 = arith.constant 0 : index
    %4 = vector.load %arg3[%c0_3, %c0_4] : memref<384x256xbf16, #tpu.memory_space<vmem>>, vector<384x256xbf16>
    %cst = arith.constant dense<0.000000e+00> : vector<8x256xf32>
    %5 = tpu.matmul %1, %4, %cst {dimension_numbers = #tpu.dot_dimension_numbers<[1], [0], [0], [1], [0, 0, 1, 1], [], []>} : vector<8x384xbf16>, vector<384x256xbf16>, vector<8x256xf32> -> vector<8x256xf32>
    %c0_5 = arith.constant 0 : index
    %c0_6 = arith.constant 0 : index
    %6 = vector.load %arg4[%c0_5, %c0_6] : memref<384x256xbf16, #tpu.memory_space<vmem>>, vector<384x256xbf16>
    %cst_7 = arith.constant dense<0.000000e+00> : vector<8x256xf32>
    %7 = tpu.matmul %3, %6, %cst_7 {dimension_numbers = #tpu.dot_dimension_numbers<[1], [0], [0], [1], [0, 0, 1, 1], [], []>} : vector<8x384xbf16>, vector<384x256xbf16>, vector<8x256xf32> -> vector<8x256xf32>
    %8 = arith.addf %5, %7 : vector<8x256xf32>
    %c0_8 = arith.constant 0 : index
    %c0_9 = arith.constant 0 : index
    %9 = vector.load %arg7[%c0_8, %c0_9] : memref<1x256xf32, #tpu.memory_space<vmem>>, vector<1x256xf32>
    %10 = vector.broadcast %9 : vector<1x256xf32> to vector<8x256xf32>
    %11 = arith.addf %8, %10 : vector<8x256xf32>
    %cst_10 = arith.constant 0.000000e+00 : f32
    %12 = vector.broadcast %cst_10 : f32 to vector<8x256xf32>
    %13 = arith.maximumf %11, %12 : vector<8x256xf32>
    %14 = arith.truncf %13 : vector<8x256xf32> to vector<8x256xbf16>
    %c0_11 = arith.constant 0 : index
    %c0_12 = arith.constant 0 : index
    %15 = vector.load %arg5[%c0_11, %c0_12] : memref<256x128xbf16, #tpu.memory_space<vmem>>, vector<256x128xbf16>
    %cst_13 = arith.constant dense<0.000000e+00> : vector<8x128xf32>
    %16 = tpu.matmul %14, %15, %cst_13 {dimension_numbers = #tpu.dot_dimension_numbers<[1], [0], [0], [1], [0, 0, 1, 1], [], []>} : vector<8x256xbf16>, vector<256x128xbf16>, vector<8x128xf32> -> vector<8x128xf32>
    %c0_14 = arith.constant 0 : index
    %c0_15 = arith.constant 0 : index
    %17 = vector.load %arg8[%c0_14, %c0_15] : memref<1x128xf32, #tpu.memory_space<vmem>>, vector<1x128xf32>
    %18 = vector.broadcast %17 : vector<1x128xf32> to vector<8x128xf32>
    %19 = arith.addf %16, %18 : vector<8x128xf32>
    %cst_16 = arith.constant 0.000000e+00 : f32
    %20 = vector.broadcast %cst_16 : f32 to vector<8x128xf32>
    %21 = arith.maximumf %19, %20 : vector<8x128xf32>
    %c0_17 = arith.constant 0 : index
    %c0_18 = arith.constant 0 : index
    %22 = vector.load %arg6[%c0_17, %c0_18] : memref<8x128xbf16, #tpu.memory_space<vmem>>, vector<8x128xbf16>
    %23 = arith.extf %22 : vector<8x128xbf16> to vector<8x128xf32>
    %cst_19 = arith.constant dense<0.000000e+00> : vector<8x8xf32>
    %24 = tpu.matmul %23, %21, %cst_19 {dimension_numbers = #tpu.dot_dimension_numbers<[1], [1], [0], [0], [0, 0, 1, 0], [], []>} : vector<8x128xf32>, vector<8x128xf32>, vector<8x8xf32> -> vector<8x8xf32>
    %25 = vector.extract_strided_slice %24 {offsets = [0, 0], sizes = [1, 8], strides = [1, 1]} : vector<8x8xf32> to vector<1x8xf32>
    %c0_20 = arith.constant 0 : index
    %c0_21 = arith.constant 0 : index
    %26 = memref.load %arg9[%c0_20, %c0_21] : memref<1x1xf32, #tpu.memory_space<smem>>
    %27 = vector.broadcast %26 : f32 to vector<1x8xf32>
    %28 = arith.addf %25, %27 : vector<1x8xf32>
    %cst_22 = arith.constant 0.000000e+00 : f32
    %29 = vector.broadcast %cst_22 : f32 to vector<1x8xf32>
    %30 = arith.subf %29, %28 : vector<1x8xf32>
    %31 = math.exp %30 : vector<1x8xf32>
    %cst_23 = arith.constant 1.000000e+00 : f32
    %32 = vector.broadcast %cst_23 : f32 to vector<1x8xf32>
    %33 = arith.addf %32, %31 : vector<1x8xf32>
    %34 = tpu.reciprocal %33 {approx = true} : vector<1x8xf32> -> vector<1x8xf32>
    %c0_24 = arith.constant 0 : index
    %c0_25 = arith.constant 0 : index
    %35 = vector.load %arg10[%c0_24, %c0_25] : memref<1x8xf32, #tpu.memory_space<vmem>>, vector<1x8xf32>
    tpu.vector_store %arg10[%c0_24, %c0_25], %34 {strides = array<i32>} : memref<1x8xf32, #tpu.memory_space<vmem>>, vector<1x8xf32>,
    return
  }
  func.func @transform_0(%arg0: i32) -> (i32, i32) {
    %c0_i32 = arith.constant 0 : i32
    %c0_i32_0 = arith.constant 0 : i32
    return %arg0, %c0_i32 : i32, i32
  }
  func.func @transform_1(%arg0: i32) -> (i32, i32) {
    %c0_i32 = arith.constant 0 : i32
    %c0_i32_0 = arith.constant 0 : i32
    return %arg0, %c0_i32 : i32, i32
  }
  func.func @transform_2(%arg0: i32) -> (i32, i32) {
    %c0_i32 = arith.constant 0 : i32
    %c0_i32_0 = arith.constant 0 : i32
    %c0_i32_1 = arith.constant 0 : i32
    return %c0_i32, %c0_i32_0 : i32, i32
  }
  func.func @transform_3(%arg0: i32) -> (i32, i32) {
    %c0_i32 = arith.constant 0 : i32
    %c0_i32_0 = arith.constant 0 : i32
    %c0_i32_1 = arith.constant 0 : i32
    return %c0_i32, %c0_i32_0 : i32, i32
  }
  func.func @transform_4(%arg0: i32) -> (i32, i32) {
    %c0_i32 = arith.constant 0 : i32
    %c0_i32_0 = arith.constant 0 : i32
    %c0_i32_1 = arith.constant 0 : i32
    return %c0_i32, %c0_i32_0 : i32, i32
  }
  func.func @transform_5(%arg0: i32) -> (i32, i32) {
    %c0_i32 = arith.constant 0 : i32
    %c0_i32_0 = arith.constant 0 : i32
    %c0_i32_1 = arith.constant 0 : i32
    return %c0_i32, %c0_i32_0 : i32, i32
  }
  func.func @transform_6(%arg0: i32) -> (i32, i32) {
    %c0_i32 = arith.constant 0 : i32
    %c0_i32_0 = arith.constant 0 : i32
    %c0_i32_1 = arith.constant 0 : i32
    return %c0_i32, %c0_i32_0 : i32, i32
  }
  func.func @transform_7(%arg0: i32) -> (i32, i32) {
    %c0_i32 = arith.constant 0 : i32
    %c0_i32_0 = arith.constant 0 : i32
    %c0_i32_1 = arith.constant 0 : i32
    return %c0_i32, %c0_i32_0 : i32, i32
  }
  func.func @transform_8(%arg0: i32) -> (i32, i32) {
    %c0_i32 = arith.constant 0 : i32
    %c0_i32_0 = arith.constant 0 : i32
    %c0_i32_1 = arith.constant 0 : i32
    return %c0_i32, %c0_i32_0 : i32, i32
  }
  func.func @transform_9(%arg0: i32) -> (i32, i32) {
    %c0_i32 = arith.constant 0 : i32
    %c0_i32_0 = arith.constant 0 : i32
    return %c0_i32, %arg0 : i32, i32
  }
}

</mosaic_0001>

<llo_original>
// kernel: tpu_custom_call.1
$region0: #{tpu_custom_call.1}
  #allocation0 [shape = 'u32[]', space=smem, size = 0x4, offset = 0x4, fixed_abs, tag = 'smem constant byte address 0x4 - core index']
  #allocation1 [shape = 'u32[144,128]{1,0:T(1,128)}', space=vmem, size = 0x12000, scoped, tag = 'internal scratch']
  #allocation2 [shape = 'f32[1,1]{1,0:T(1,128)S(6)}', space=smem, size = 0x200, scoped, tag = 'scoped memory for tpu_custom_call.1']
  %s0 = inlined_call_operand.hbm [shape: f32[8,384], index: 0, kind: input, shape index: {}]
  %s1 = inlined_call_operand.hbm [shape: f32[8,384], index: 1, kind: input, shape index: {}]
  %s2 = inlined_call_operand.hbm [shape: bf16[384,256], index: 2, kind: input, shape index: {}]
  %s3 = inlined_call_operand.hbm [shape: bf16[384,256], index: 3, kind: input, shape index: {}]
  %s4 = inlined_call_operand.hbm [shape: bf16[256,128], index: 4, kind: input, shape index: {}]
  %s5 = inlined_call_operand.vmem [shape: bf16[8,128], index: 5, kind: input, shape index: {}]
  %s6 = inlined_call_operand.vmem [shape: f32[1,256], index: 6, kind: input, shape index: {}]
  %s7 = inlined_call_operand.vmem [shape: f32[1,128], index: 7, kind: input, shape index: {}]
  %s8 = inlined_call_operand.<no memory space> [shape: f32[1,1], index: 8, kind: input, shape index: {}]
  %s9 = inlined_call_operand.hbm [shape: f32[1,8], index: 9, kind: output, shape index: {}]
  %s10 = sld [smem:[#allocation0]]
  $region66: #{tpu_custom_call.1} parent=0
    _
  %s12 = ssub.s32 1, %s10
  %s13 = scalar_select 0, %s12, %s10
  %14 = sst [smem:[#allocation2]] %s8
  $region1: #{tpu_custom_call.1} parent=0
    #allocation3 [shape = 'u8[12288]{0}', space=vmem, size = 0x3000, scoped, tag = 'input window, operand 0, single buffered']
    #allocation4 [shape = 's32[1]{0}', space=sflag, size = 0x4, scoped, tag = 'scoped memory for tpu_custom_call.1']
    #allocation5 [shape = 's32[1]{0}', space=sflag, size = 0x4, scoped, tag = 'scoped memory for tpu_custom_call.1']
    #allocation6 [shape = 'u8[12288]{0}', space=vmem, size = 0x3000, scoped, tag = 'input window, operand 1, single buffered']
    #allocation7 [shape = 's32[1]{0}', space=sflag, size = 0x4, scoped, tag = 'scoped memory for tpu_custom_call.1']
    #allocation8 [shape = 'u8[196608]{0}', space=vmem, size = 0x30000, scoped, tag = 'input window, operand 2, single buffered']
    #allocation9 [shape = 'u8[196608]{0}', space=vmem, size = 0x30000, scoped, tag = 'input window, operand 3, single buffered']
    #allocation10 [shape = 's32[1]{0}', space=sflag, size = 0x4, scoped, tag = 'scoped memory for tpu_custom_call.1']
    #allocation11 [shape = 'u8[65536]{0}', space=vmem, size = 0x10000, scoped, tag = 'input window, operand 4, single buffered']
    #allocation12 [shape = 'u8[512]{0}', space=vmem, size = 0x400, scoped, tag = 'output window, operand 0, single buffered']
    %15 = vsyncpa [#allocation4], 0
    %16 = vsyncpa [#allocation7], 0
    %17 = vsyncpa [#allocation10], 0
    %18 = vsyncpa [#allocation5], 0
    // Predicated region
    $region2: #{tpu_custom_call.1} parent=1 // pred_check
      _
    $region3: #{tpu_custom_call.1} parent=1 // pred_check_branch
      %20 = sbr.rel (0) target = $region5
    $region4: #{tpu_custom_call.1} parent=1 // pred_region
      %s22 = ssub.s32 384, 384
      %23 = vsyncadd [#allocation4], %s22
      %s25 = sshll.u32 [#allocation3], 4
      %s26 = int_to_ptr.vmem [resolvable:$true] %s25
      %28 = dma.hbm_to_vmem [thread:$0]  %s0, 384, %s26, [#allocation4]
    $region5: #{tpu_custom_call.1} parent=1 // pred_fallthru
      _
    // Predicated region
    $region6: #{tpu_custom_call.1} parent=1 // pred_check
      _
    $region7: #{tpu_custom_call.1} parent=1 // pred_check_branch
      %30 = sbr.rel (0) target = $region9
    $region8: #{tpu_custom_call.1} parent=1 // pred_region
      %s32 = ssub.s32 384, 384
      %33 = vsyncadd [#allocation7], %s32
      %s35 = sshll.u32 [#allocation6], 4
      %s36 = int_to_ptr.vmem [resolvable:$true] %s35
      %38 = dma.hbm_to_vmem [thread:$0]  %s1, 384, %s36, [#allocation7]
    $region9: #{tpu_custom_call.1} parent=1 // pred_fallthru
      _
    // Predicated region
    $region10: #{tpu_custom_call.1} parent=1 // pred_check
      _
    $region11: #{tpu_custom_call.1} parent=1 // pred_check_branch
      %40 = sbr.rel (0) target = $region13
    $region12: #{tpu_custom_call.1} parent=1 // pred_region
      %s42 = ssub.s32 6144, 6144
      %43 = vsyncadd [#allocation7], %s42
      %s44 = sshll.u32 [#allocation8], 4
      %s45 = int_to_ptr.vmem [resolvable:$true] %s44
      %50 = dma.hbm_to_vmem [thread:$0]  %s2, 6144, %s45, [#allocation7], 128, 128, 8
    $region13: #{tpu_custom_call.1} parent=1 // pred_fallthru
      _
    // Predicated region
    $region14: #{tpu_custom_call.1} parent=1 // pred_check
      _
    $region15: #{tpu_custom_call.1} parent=1 // pred_check_branch
      %52 = sbr.rel (0) target = $region17
    $region16: #{tpu_custom_call.1} parent=1 // pred_region
      %s54 = ssub.s32 6144, 6144
      %55 = vsyncadd [#allocation10], %s54
      %s56 = sshll.u32 [#allocation9], 4
      %s57 = int_to_ptr.vmem [resolvable:$true] %s56
      %62 = dma.hbm_to_vmem [thread:$0]  %s3, 6144, %s57, [#allocation10], 128, 128, 8
    $region17: #{tpu_custom_call.1} parent=1 // pred_fallthru
      _
    // Predicated region
    $region18: #{tpu_custom_call.1} parent=1 // pred_check
      _
    $region19: #{tpu_custom_call.1} parent=1 // pred_check_branch
      %64 = sbr.rel (0) target = $region21
    $region20: #{tpu_custom_call.1} parent=1 // pred_region
      %s66 = ssub.s32 2048, 2048
      %67 = vsyncadd [#allocation10], %s66
      %s68 = sshll.u32 [#allocation11], 4
      %s69 = int_to_ptr.vmem [resolvable:$true] %s68
      %74 = dma.hbm_to_vmem [thread:$0]  %s4, 2048, %s69, [#allocation10], 64, 64, 4
    $region21: #{tpu_custom_call.1} parent=1 // pred_fallthru
      _
    // Predicated region
    $region22: #{tpu_custom_call.1} parent=1 // pred_check
      _
    $region23: #{tpu_custom_call.1} parent=1 // pred_check_branch
      %76 = sbr.rel (0) target = $region25
    $region24: #{tpu_custom_call.1} parent=1 // pred_region
      _
    $region25: #{tpu_custom_call.1} parent=1 // pred_fallthru
      _
    // Predicated region
    $region26: #{tpu_custom_call.1} parent=1 // pred_check
      _
    $region27: #{tpu_custom_call.1} parent=1 // pred_check_branch
      %78 = sbr.rel (0) target = $region29
    $region28: #{tpu_custom_call.1} parent=1 // pred_region
      _
    $region29: #{tpu_custom_call.1} parent=1 // pred_fallthru
      _
    // Predicated region
    $region30: #{tpu_custom_call.1} parent=1 // pred_check
      _
    $region31: #{tpu_custom_call.1} parent=1 // pred_check_branch
      %80 = sbr.rel (0) target = $region33
    $region32: #{tpu_custom_call.1} parent=1 // pred_region
      _
    $region33: #{tpu_custom_call.1} parent=1 // pred_fallthru
      _
    // Predicated region
    $region34: #{tpu_custom_call.1} parent=1 // pred_check
      _
    $region35: #{tpu_custom_call.1} parent=1 // pred_check_branch
      %82 = sbr.rel (0) target = $region37
    $region36: #{tpu_custom_call.1} parent=1 // pred_region
      _
    $region37: #{tpu_custom_call.1} parent=1 // pred_fallthru
      _
    // Predicated region
    $region38: #{tpu_custom_call.1} parent=1 // pred_check
      _
    $region39: #{tpu_custom_call.1} parent=1 // pred_check_branch
      %84 = sbr.rel (0) target = $region41
    $region40: #{tpu_custom_call.1} parent=1 // pred_region
      %85 = dma.done [#allocation4], 384
    $region41: #{tpu_custom_call.1} parent=1 // pred_fallthru
      _
    // Predicated region
    $region42: #{tpu_custom_call.1} parent=1 // pred_check
      _
    $region43: #{tpu_custom_call.1} parent=1 // pred_check_branch
      %87 = sbr.rel (0) target = $region45
    $region44: #{tpu_custom_call.1} parent=1 // pred_region
      %88 = dma.done [#allocation7], 384
    $region45: #{tpu_custom_call.1} parent=1 // pred_fallthru
      _
    // Predicated region
    $region46: #{tpu_custom_call.1} parent=1 // pred_check
      _
    $region47: #{tpu_custom_call.1} parent=1 // pred_check_branch
      %90 = sbr.rel (0) target = $region49
    $region48: #{tpu_custom_call.1} parent=1 // pred_region
      %91 = dma.done [#allocation7], 6144
    $region49: #{tpu_custom_call.1} parent=1 // pred_fallthru
      _
    // Predicated region
    $region50: #{tpu_custom_call.1} parent=1 // pred_check
      _
    $region51: #{tpu_custom_call.1} parent=1 // pred_check_branch
      %93 = sbr.rel (0) target = $region53
    $region52: #{tpu_custom_call.1} parent=1 // pred_region
      %94 = dma.done [#allocation10], 6144
    $region53: #{tpu_custom_call.1} parent=1 // pred_fallthru
      _
    // Predicated region
    $region54: #{tpu_custom_call.1} parent=1 // pred_check
      _
    $region55: #{tpu_custom_call.1} parent=1 // pred_check_branch
      %96 = sbr.rel (0) target = $region57
    $region56: #{tpu_custom_call.1} parent=1 // pred_region
      %97 = dma.done [#allocation10], 2048
    $region57: #{tpu_custom_call.1} parent=1 // pred_fallthru
      _
    %v99 = vld [vmem:[#allocation3] sm:$0xff]
    %v100 = vld [vmem:[#allocation3 + $0x8] sm:$0xff]
    %v101 = vld [vmem:[#allocation3 + $0x10] sm:$0xff]
    %v102 = vpack.c.bf16 %v99, %v99
    %v103 = vpack.c.bf16 %v100, %v100
    %v104 = vpack.c.bf16 %v101, %v101
    %v105 = vld [vmem:[#allocation6] sm:$0xff]
    %v106 = vld [vmem:[#allocation6 + $0x8] sm:$0xff]
    %v107 = vld [vmem:[#allocation6 + $0x10] sm:$0xff]
    %v108 = vpack.c.bf16 %v105, %v105
    %v109 = vpack.c.bf16 %v106, %v106
    %v110 = vpack.c.bf16 %v107, %v107
    %v111 = vld [vmem:[#allocation8] sm:$0xff]
    %v112 = vld [vmem:[#allocation8 + $0x8] sm:$0xff]
    %v113 = vld [vmem:[#allocation8 + $0x10] sm:$0xff]
    %v114 = vld [vmem:[#allocation8 + $0x18] sm:$0xff]
    %v115 = vld [vmem:[#allocation8 + $0x20] sm:$0xff]
    %v116 = vld [vmem:[#allocation8 + $0x28] sm:$0xff]
    %v117 = vld [vmem:[#allocation8 + $0x30] sm:$0xff]
    %v118 = vld [vmem:[#allocation8 + $0x38] sm:$0xff]
    %v119 = vld [vmem:[#allocation8 + $0x40] sm:$0xff]
    %v120 = vld [vmem:[#allocation8 + $0x48] sm:$0xff]
    %v121 = vld [vmem:[#allocation8 + $0x50] sm:$0xff]
    %v122 = vld [vmem:[#allocation8 + $0x58] sm:$0xff]
    %v123 = vld [vmem:[#allocation8 + $0x60] sm:$0xff]
    %v124 = vld [vmem:[#allocation8 + $0x68] sm:$0xff]
    %v125 = vld [vmem:[#allocation8 + $0x70] sm:$0xff]
    %v126 = vld [vmem:[#allocation8 + $0x78] sm:$0xff]
    %v127 = vld [vmem:[#allocation8 + $0x80] sm:$0xff]
    %v128 = vld [vmem:[#allocation8 + $0x88] sm:$0xff]
    %v129 = vld [vmem:[#allocation8 + $0x90] sm:$0xff]
    %v130 = vld [vmem:[#allocation8 + $0x98] sm:$0xff]
    %v131 = vld [vmem:[#allocation8 + $0xa0] sm:$0xff]
    %v132 = vld [vmem:[#allocation8 + $0xa8] sm:$0xff]
    %v133 = vld [vmem:[#allocation8 + $0xb0] sm:$0xff]
    %v134 = vld [vmem:[#allocation8 + $0xb8] sm:$0xff]
    %v135 = vld [vmem:[#allocation8 + $0xc0] sm:$0xff]
    %v136 = vld [vmem:[#allocation8 + $0xc8] sm:$0xff]
    %v137 = vld [vmem:[#allocation8 + $0xd0] sm:$0xff]
    %v138 = vld [vmem:[#allocation8 + $0xd8] sm:$0xff]
    %v139 = vld [vmem:[#allocation8 + $0xe0] sm:$0xff]
    %v140 = vld [vmem:[#allocation8 + $0xe8] sm:$0xff]
    %v141 = vld [vmem:[#allocation8 + $0xf0] sm:$0xff]
    %v142 = vld [vmem:[#allocation8 + $0xf8] sm:$0xff]
    %v143 = vld [vmem:[#allocation8 + $0x100] sm:$0xff]
    %v144 = vld [vmem:[#allocation8 + $0x108] sm:$0xff]
    %v145 = vld [vmem:[#allocation8 + $0x110] sm:$0xff]
    %v146 = vld [vmem:[#allocation8 + $0x118] sm:$0xff]
    %v147 = vld [vmem:[#allocation8 + $0x120] sm:$0xff]
    %v148 = vld [vmem:[#allocation8 + $0x128] sm:$0xff]
    %v149 = vld [vmem:[#allocation8 + $0x130] sm:$0xff]
    %v150 = vld [vmem:[#allocation8 + $0x138] sm:$0xff]
    %v151 = vld [vmem:[#allocation8 + $0x140] sm:$0xff]
    %v152 = vld [vmem:[#allocation8 + $0x148] sm:$0xff]
    %v153 = vld [vmem:[#allocation8 + $0x150] sm:$0xff]
    %v154 = vld [vmem:[#allocation8 + $0x158] sm:$0xff]
    %v155 = vld [vmem:[#allocation8 + $0x160] sm:$0xff]
    %v156 = vld [vmem:[#allocation8 + $0x168] sm:$0xff]
    %v157 = vld [vmem:[#allocation8 + $0x170] sm:$0xff]
    %v158 = vld [vmem:[#allocation8 + $0x178] sm:$0xff]
    %v159 = vld [vmem:[#allocation9] sm:$0xff]
    %v160 = vld [vmem:[#allocation9 + $0x8] sm:$0xff]
    %v161 = vld [vmem:[#allocation9 + $0x10] sm:$0xff]
    %v162 = vld [vmem:[#allocation9 + $0x18] sm:$0xff]
    %v163 = vld [vmem:[#allocation9 + $0x20] sm:$0xff]
    %v164 = vld [vmem:[#allocation9 + $0x28] sm:$0xff]
    %v165 = vld [vmem:[#allocation9 + $0x30] sm:$0xff]
    %v166 = vld [vmem:[#allocation9 + $0x38] sm:$0xff]
    %v167 = vld [vmem:[#allocation9 + $0x40] sm:$0xff]
    %v168 = vld [vmem:[#allocation9 + $0x48] sm:$0xff]
    %v169 = vld [vmem:[#allocation9 + $0x50] sm:$0xff]
    %v170 = vld [vmem:[#allocation9 + $0x58] sm:$0xff]
    %v171 = vld [vmem:[#allocation9 + $0x60] sm:$0xff]
    %v172 = vld [vmem:[#allocation9 + $0x68] sm:$0xff]
    %v173 = vld [vmem:[#allocation9 + $0x70] sm:$0xff]
    %v174 = vld [vmem:[#allocation9 + $0x78] sm:$0xff]
    %v175 = vld [vmem:[#allocation9 + $0x80] sm:$0xff]
    %v176 = vld [vmem:[#allocation9 + $0x88] sm:$0xff]
    %v177 = vld [vmem:[#allocation9 + $0x90] sm:$0xff]
    %v178 = vld [vmem:[#allocation9 + $0x98] sm:$0xff]
    %v179 = vld [vmem:[#allocation9 + $0xa0] sm:$0xff]
    %v180 = vld [vmem:[#allocation9 + $0xa8] sm:$0xff]
    %v181 = vld [vmem:[#allocation9 + $0xb0] sm:$0xff]
    %v182 = vld [vmem:[#allocation9 + $0xb8] sm:$0xff]
    %v183 = vld [vmem:[#allocation9 + $0xc0] sm:$0xff]
    %v184 = vld [vmem:[#allocation9 + $0xc8] sm:$0xff]
    %v185 = vld [vmem:[#allocation9 + $0xd0] sm:$0xff]
    %v186 = vld [vmem:[#allocation9 + $0xd8] sm:$0xff]
    %v187 = vld [vmem:[#allocation9 + $0xe0] sm:$0xff]
    %v188 = vld [vmem:[#allocation9 + $0xe8] sm:$0xff]
    %v189 = vld [vmem:[#allocation9 + $0xf0] sm:$0xff]
    %v190 = vld [vmem:[#allocation9 + $0xf8] sm:$0xff]
    %v191 = vld [vmem:[#allocation9 + $0x100] sm:$0xff]
    %v192 = vld [vmem:[#allocation9 + $0x108] sm:$0xff]
    %v193 = vld [vmem:[#allocation9 + $0x110] sm:$0xff]
    %v194 = vld [vmem:[#allocation9 + $0x118] sm:$0xff]
    %v195 = vld [vmem:[#allocation9 + $0x120] sm:$0xff]
    %v196 = vld [vmem:[#allocation9 + $0x128] sm:$0xff]
    %v197 = vld [vmem:[#allocation9 + $0x130] sm:$0xff]
    %v198 = vld [vmem:[#allocation9 + $0x138] sm:$0xff]
    %v199 = vld [vmem:[#allocation9 + $0x140] sm:$0xff]
    %v200 = vld [vmem:[#allocation9 + $0x148] sm:$0xff]
    %v201 = vld [vmem:[#allocation9 + $0x150] sm:$0xff]
    %v202 = vld [vmem:[#allocation9 + $0x158] sm:$0xff]
    %v203 = vld [vmem:[#allocation9 + $0x160] sm:$0xff]
    %v204 = vld [vmem:[#allocation9 + $0x168] sm:$0xff]
    %v205 = vld [vmem:[#allocation9 + $0x170] sm:$0xff]
    %v206 = vld [vmem:[#allocation9 + $0x178] sm:$0xff]
    %v255 = vunpack.c.l.b16 %v159
    %v256 = vunpack.c.h.b16 %v159
    %v257 = vunpack.c.l.b16 %v160
    %v258 = vunpack.c.h.b16 %v160
    %v259 = vunpack.c.l.b16 %v161
    %v260 = vunpack.c.h.b16 %v161
    %v261 = vunpack.c.l.b16 %v162
    %v262 = vunpack.c.h.b16 %v162
    %v263 = vunpack.c.l.b16 %v163
    %v264 = vunpack.c.h.b16 %v163
    %v265 = vunpack.c.l.b16 %v164
    %v266 = vunpack.c.h.b16 %v164
    %v267 = vunpack.c.l.b16 %v165
    %v268 = vunpack.c.h.b16 %v165
    %v269 = vunpack.c.l.b16 %v166
    %v270 = vunpack.c.h.b16 %v166
    %v271 = vunpack.c.l.b16 %v167
    %v272 = vunpack.c.h.b16 %v167
    %v273 = vunpack.c.l.b16 %v168
    %v274 = vunpack.c.h.b16 %v168
    %v275 = vunpack.c.l.b16 %v169
    %v276 = vunpack.c.h.b16 %v169
    %v277 = vunpack.c.l.b16 %v170
    %v278 = vunpack.c.h.b16 %v170
    %v279 = vunpack.c.l.b16 %v171
    %v280 = vunpack.c.h.b16 %v171
    %v281 = vunpack.c.l.b16 %v172
    %v282 = vunpack.c.h.b16 %v172
    %v283 = vunpack.c.l.b16 %v173
    %v284 = vunpack.c.h.b16 %v173
    %v285 = vunpack.c.l.b16 %v174
    %v286 = vunpack.c.h.b16 %v174
    %v287 = vunpack.c.l.b16 %v175
    %v288 = vunpack.c.h.b16 %v175
    %v289 = vunpack.c.l.b16 %v176
    %v290 = vunpack.c.h.b16 %v176
    %v291 = vunpack.c.l.b16 %v177
    %v292 = vunpack.c.h.b16 %v177
    %v293 = vunpack.c.l.b16 %v178
    %v294 = vunpack.c.h.b16 %v178
    %v295 = vunpack.c.l.b16 %v179
    %v296 = vunpack.c.h.b16 %v179
    %v297 = vunpack.c.l.b16 %v180
    %v298 = vunpack.c.h.b16 %v180
    %v299 = vunpack.c.l.b16 %v181
    %v300 = vunpack.c.h.b16 %v181
    %v301 = vunpack.c.l.b16 %v182
    %v302 = vunpack.c.h.b16 %v182
    %v303 = vunpack.c.l.b16 %v183
    %v304 = vunpack.c.h.b16 %v183
    %v305 = vunpack.c.l.b16 %v184
    %v306 = vunpack.c.h.b16 %v184
    %v307 = vunpack.c.l.b16 %v185
    %v308 = vunpack.c.h.b16 %v185
    %v309 = vunpack.c.l.b16 %v186
    %v310 = vunpack.c.h.b16 %v186
    %v311 = vunpack.c.l.b16 %v187
    %v312 = vunpack.c.h.b16 %v187
    %v313 = vunpack.c.l.b16 %v188
    %v314 = vunpack.c.h.b16 %v188
    %v315 = vunpack.c.l.b16 %v189
    %v316 = vunpack.c.h.b16 %v189
    %v317 = vunpack.c.l.b16 %v190
    %v318 = vunpack.c.h.b16 %v190
    %v319 = vunpack.c.l.b16 %v191
    %v320 = vunpack.c.h.b16 %v191
    %v321 = vunpack.c.l.b16 %v192
    %v322 = vunpack.c.h.b16 %v192
    %v323 = vunpack.c.l.b16 %v193
    %v324 = vunpack.c.h.b16 %v193
    %v325 = vunpack.c.l.b16 %v194
    %v326 = vunpack.c.h.b16 %v194
    %v327 = vunpack.c.l.b16 %v195
    %v328 = vunpack.c.h.b16 %v195
    %v329 = vunpack.c.l.b16 %v196
    %v330 = vunpack.c.h.b16 %v196
    %v331 = vunpack.c.l.b16 %v197
    %v332 = vunpack.c.h.b16 %v197
    %v333 = vunpack.c.l.b16 %v198
    %v334 = vunpack.c.h.b16 %v198
    %v335 = vunpack.c.l.b16 %v199
    %v336 = vunpack.c.h.b16 %v199
    %v337 = vunpack.c.l.b16 %v200
    %v338 = vunpack.c.h.b16 %v200
    %v339 = vunpack.c.l.b16 %v201
    %v340 = vunpack.c.h.b16 %v201
    %v341 = vunpack.c.l.b16 %v202
    %v342 = vunpack.c.h.b16 %v202
    %v343 = vunpack.c.l.b16 %v203
    %v344 = vunpack.c.h.b16 %v203
    %v345 = vunpack.c.l.b16 %v204
    %v346 = vunpack.c.h.b16 %v204
    %v347 = vunpack.c.l.b16 %v205
    %v348 = vunpack.c.h.b16 %v205
    %v349 = vunpack.c.l.b16 %v206
    %v350 = vunpack.c.h.b16 %v206
    %v351 = vpack.c.b16 %v257, %v255
    %v352 = vpack.c.b16 %v258, %v256
    %v353 = vpack.c.b16 %v261, %v259
    %v354 = vpack.c.b16 %v262, %v260
    %v355 = vpack.c.b16 %v265, %v263
    %v356 = vpack.c.b16 %v266, %v264
    %v357 = vpack.c.b16 %v269, %v267
    %v358 = vpack.c.b16 %v270, %v268
    %v359 = vpack.c.b16 %v273, %v271
    %v360 = vpack.c.b16 %v274, %v272
    %v361 = vpack.c.b16 %v277, %v275
    %v362 = vpack.c.b16 %v278, %v276
    %v363 = vpack.c.b16 %v281, %v279
    %v364 = vpack.c.b16 %v282, %v280
    %v365 = vpack.c.b16 %v285, %v283
    %v366 = vpack.c.b16 %v286, %v284
    %v367 = vpack.c.b16 %v289, %v287
    %v368 = vpack.c.b16 %v290, %v288
    %v369 = vpack.c.b16 %v293, %v291
    %v370 = vpack.c.b16 %v294, %v292
    %v371 = vpack.c.b16 %v297, %v295
    %v372 = vpack.c.b16 %v298, %v296
    %v373 = vpack.c.b16 %v301, %v299
    %v374 = vpack.c.b16 %v302, %v300
    %v375 = vpack.c.b16 %v305, %v303
    %v376 = vpack.c.b16 %v306, %v304
    %v377 = vpack.c.b16 %v309, %v307
    %v378 = vpack.c.b16 %v310, %v308
    %v379 = vpack.c.b16 %v313, %v311
    %v380 = vpack.c.b16 %v314, %v312
    %v381 = vpack.c.b16 %v317, %v315
    %v382 = vpack.c.b16 %v318, %v316
    %v383 = vpack.c.b16 %v321, %v319
    %v384 = vpack.c.b16 %v322, %v320
    %v385 = vpack.c.b16 %v325, %v323
    %v386 = vpack.c.b16 %v326, %v324
    %v387 = vpack.c.b16 %v329, %v327
    %v388 = vpack.c.b16 %v330, %v328
    %v389 = vpack.c.b16 %v333, %v331
    %v390 = vpack.c.b16 %v334, %v332
    %v391 = vpack.c.b16 %v337, %v335
    %v392 = vpack.c.b16 %v338, %v336
    %v393 = vpack.c.b16 %v341, %v339
    %v394 = vpack.c.b16 %v342, %v340
    %v395 = vpack.c.b16 %v345, %v343
    %v396 = vpack.c.b16 %v346, %v344
    %v397 = vpack.c.b16 %v349, %v347
    %v398 = vpack.c.b16 %v350, %v348
    %447 = vmatprep.subr.bf16.mxu0 %v352
    %448 = vmatpush1.bf16.msra.mxu0 %v351
    %449 = vmatprep.subr.bf16.mxu0 %v354
    %450 = vmatpush1.bf16.msra.mxu0 %v353
    %451 = vmatprep.subr.bf16.mxu0 %v356
    %452 = vmatpush1.bf16.msra.mxu0 %v355
    %453 = vmatprep.subr.bf16.mxu0 %v358
    %454 = vmatpush1.bf16.msra.mxu0 %v357
    %455 = vmatprep.subr.bf16.mxu0 %v360
    %456 = vmatpush1.bf16.msra.mxu0 %v359
    %457 = vmatprep.subr.bf16.mxu0 %v362
    %458 = vmatpush1.bf16.msra.mxu0 %v361
    %459 = vmatprep.subr.bf16.mxu0 %v364
    %460 = vmatpush1.bf16.msra.mxu0 %v363
    %461 = vmatprep.subr.bf16.mxu0 %v366
    %462 = vmatpush1.bf16.msra.mxu0 %v365
    %463 = vmatprep.subr.bf16.mxu0 %v368
    %464 = vmatpush1.bf16.msra.mxu0 %v367
    %465 = vmatprep.subr.bf16.mxu0 %v370
    %466 = vmatpush1.bf16.msra.mxu0 %v369
    %467 = vmatprep.subr.bf16.mxu0 %v372
    %468 = vmatpush1.bf16.msra.mxu0 %v371
    %469 = vmatprep.subr.bf16.mxu0 %v374
    %470 = vmatpush1.bf16.msra.mxu0 %v373
    %471 = vmatprep.subr.bf16.mxu0 %v376
    %472 = vmatpush1.bf16.msra.mxu0 %v375
    %473 = vmatprep.subr.bf16.mxu0 %v378
    %474 = vmatpush1.bf16.msra.mxu0 %v377
    %475 = vmatprep.subr.bf16.mxu0 %v380
    %476 = vmatpush1.bf16.msra.mxu0 %v379
    %477 = vmatprep.subr.bf16.mxu0 %v382
    %478 = vmatpush1.bf16.msra.mxu0 %v381
    %479 = vmatprep.mubr.bf16.mxu0 %v109
    %480 = vmatmul.mubr.bf16.gmra.mrb[0].mxu0 %v108
    %v481 = vpop.f32.mrb[0].mxu0
    %v482 = vadd.f32 0.0, %v481
    %v483 = vpop.f32.mrb[0].mxu0
    %v484 = vadd.f32 0.0, %v483
    %v485 = vpop.f32.mrb[0].mxu0
    %v486 = vpop.f32.mrb[0].mxu0
    %487 = vdwg.mxu0
    %488 = vmatprep.subr.bf16.mxu0 %v384
    %489 = vmatpush1.bf16.msra.mxu0 %v383
    %490 = vmatprep.subr.bf16.mxu0 %v386
    %491 = vmatpush1.bf16.msra.mxu0 %v385
    %492 = vmatprep.subr.bf16.mxu0 %v388
    %493 = vmatpush1.bf16.msra.mxu0 %v387
    %494 = vmatprep.subr.bf16.mxu0 %v390
    %495 = vmatpush1.bf16.msra.mxu0 %v389
    %496 = vmatprep.subr.bf16.mxu0 %v392
    %497 = vmatpush1.bf16.msra.mxu0 %v391
    %498 = vmatprep.subr.bf16.mxu0 %v394
    %499 = vmatpush1.bf16.msra.mxu0 %v393
    %500 = vmatprep.subr.bf16.mxu0 %v396
    %501 = vmatpush1.bf16.msra.mxu0 %v395
    %502 = vmatprep.subr.bf16.mxu0 %v398
    %503 = vmatpush1.bf16.msra.mxu0 %v397
    %504 = vmatprep.subr.bf16.mxu0 0
    %505 = vmatpush1.bf16.msra.mxu0 0
    %506 = vmatprep.subr.bf16.mxu0 0
    %507 = vmatpush1.bf16.msra.mxu0 0
    %508 = vmatprep.subr.bf16.mxu0 0
    %509 = vmatpush1.bf16.msra.mxu0 0
    %510 = vmatprep.subr.bf16.mxu0 0
    %511 = vmatpush1.bf16.msra.mxu0 0
    %512 = vmatprep.subr.bf16.mxu0 0
    %513 = vmatpush1.bf16.msra.mxu0 0
    %514 = vmatprep.subr.bf16.mxu0 0
    %515 = vmatpush1.bf16.msra.mxu0 0
    %516 = vmatprep.subr.bf16.mxu0 0
    %517 = vmatpush1.bf16.msra.mxu0 0
    %518 = vmatprep.subr.bf16.mxu0 0
    %519 = vmatpush1.bf16.msra.mxu0 0
    %520 = vmatprep.mubr.bf16.mxu0 0
    %521 = vmatmul.mubr.bf16.gmra.mrb[0].mxu0 %v110
    %v522 = vpop.f32.mrb[0].mxu0
    %v523 = vadd.f32 %v482, %v522
    %v524 = vpop.f32.mrb[0].mxu0
    %v525 = vadd.f32 %v484, %v524
    %v526 = vpop.f32.mrb[0].mxu0
    %v527 = vpop.f32.mrb[0].mxu0
    %528 = vdwg.mxu0
    %v577 = vunpack.c.l.b16 %v111
    %v578 = vunpack.c.h.b16 %v111
    %v579 = vunpack.c.l.b16 %v112
    %v580 = vunpack.c.h.b16 %v112
    %v581 = vunpack.c.l.b16 %v113
    %v582 = vunpack.c.h.b16 %v113
    %v583 = vunpack.c.l.b16 %v114
    %v584 = vunpack.c.h.b16 %v114
    %v585 = vunpack.c.l.b16 %v115
    %v586 = vunpack.c.h.b16 %v115
    %v587 = vunpack.c.l.b16 %v116
    %v588 = vunpack.c.h.b16 %v116
    %v589 = vunpack.c.l.b16 %v117
    %v590 = vunpack.c.h.b16 %v117
    %v591 = vunpack.c.l.b16 %v118
    %v592 = vunpack.c.h.b16 %v118
    %v593 = vunpack.c.l.b16 %v119
    %v594 = vunpack.c.h.b16 %v119
    %v595 = vunpack.c.l.b16 %v120
    %v596 = vunpack.c.h.b16 %v120
    %v597 = vunpack.c.l.b16 %v121
    %v598 = vunpack.c.h.b16 %v121
    %v599 = vunpack.c.l.b16 %v122
    %v600 = vunpack.c.h.b16 %v122
    %v601 = vunpack.c.l.b16 %v123
    %v602 = vunpack.c.h.b16 %v123
    %v603 = vunpack.c.l.b16 %v124
    %v604 = vunpack.c.h.b16 %v124
    %v605 = vunpack.c.l.b16 %v125
    %v606 = vunpack.c.h.b16 %v125
    %v607 = vunpack.c.l.b16 %v126
    %v608 = vunpack.c.h.b16 %v126
    %v609 = vunpack.c.l.b16 %v127
    %v610 = vunpack.c.h.b16 %v127
    %v611 = vunpack.c.l.b16 %v128
    %v612 = vunpack.c.h.b16 %v128
    %v613 = vunpack.c.l.b16 %v129
    %v614 = vunpack.c.h.b16 %v129
    %v615 = vunpack.c.l.b16 %v130
    %v616 = vunpack.c.h.b16 %v130
    %v617 = vunpack.c.l.b16 %v131
    %v618 = vunpack.c.h.b16 %v131
    %v619 = vunpack.c.l.b16 %v132
    %v620 = vunpack.c.h.b16 %v132
    %v621 = vunpack.c.l.b16 %v133
    %v622 = vunpack.c.h.b16 %v133
    %v623 = vunpack.c.l.b16 %v134
    %v624 = vunpack.c.h.b16 %v134
    %v625 = vunpack.c.l.b16 %v135
    %v626 = vunpack.c.h.b16 %v135
    %v627 = vunpack.c.l.b16 %v136
    %v628 = vunpack.c.h.b16 %v136
    %v629 = vunpack.c.l.b16 %v137
    %v630 = vunpack.c.h.b16 %v137
    %v631 = vunpack.c.l.b16 %v138
    %v632 = vunpack.c.h.b16 %v138
    %v633 = vunpack.c.l.b16 %v139
    %v634 = vunpack.c.h.b16 %v139
    %v635 = vunpack.c.l.b16 %v140
    %v636 = vunpack.c.h.b16 %v140
    %v637 = vunpack.c.l.b16 %v141
    %v638 = vunpack.c.h.b16 %v141
    %v639 = vunpack.c.l.b16 %v142
    %v640 = vunpack.c.h.b16 %v142
    %v641 = vunpack.c.l.b16 %v143
    %v642 = vunpack.c.h.b16 %v143
    %v643 = vunpack.c.l.b16 %v144
    %v644 = vunpack.c.h.b16 %v144
    %v645 = vunpack.c.l.b16 %v145
    %v646 = vunpack.c.h.b16 %v145
    %v647 = vunpack.c.l.b16 %v146
    %v648 = vunpack.c.h.b16 %v146
    %v649 = vunpack.c.l.b16 %v147
    %v650 = vunpack.c.h.b16 %v147
    %v651 = vunpack.c.l.b16 %v148
    %v652 = vunpack.c.h.b16 %v148
    %v653 = vunpack.c.l.b16 %v149
    %v654 = vunpack.c.h.b16 %v149
    %v655 = vunpack.c.l.b16 %v150
    %v656 = vunpack.c.h.b16 %v150
    %v657 = vunpack.c.l.b16 %v151
    %v658 = vunpack.c.h.b16 %v151
    %v659 = vunpack.c.l.b16 %v152
    %v660 = vunpack.c.h.b16 %v152
    %v661 = vunpack.c.l.b16 %v153
    %v662 = vunpack.c.h.b16 %v153
    %v663 = vunpack.c.l.b16 %v154
    %v664 = vunpack.c.h.b16 %v154
    %v665 = vunpack.c.l.b16 %v155
    %v666 = vunpack.c.h.b16 %v155
    %v667 = vunpack.c.l.b16 %v156
    %v668 = vunpack.c.h.b16 %v156
    %v669 = vunpack.c.l.b16 %v157
    %v670 = vunpack.c.h.b16 %v157
    %v671 = vunpack.c.l.b16 %v158
    %v672 = vunpack.c.h.b16 %v158
    %v673 = vpack.c.b16 %v579, %v577
    %v674 = vpack.c.b16 %v580, %v578
    %v675 = vpack.c.b16 %v583, %v581
    %v676 = vpack.c.b16 %v584, %v582
    %v677 = vpack.c.b16 %v587, %v585
    %v678 = vpack.c.b16 %v588, %v586
    %v679 = vpack.c.b16 %v591, %v589
    %v680 = vpack.c.b16 %v592, %v590
    %v681 = vpack.c.b16 %v595, %v593
    %v682 = vpack.c.b16 %v596, %v594
    %v683 = vpack.c.b16 %v599, %v597
    %v684 = vpack.c.b16 %v600, %v598
    %v685 = vpack.c.b16 %v603, %v601
    %v686 = vpack.c.b16 %v604, %v602
    %v687 = vpack.c.b16 %v607, %v605
    %v688 = vpack.c.b16 %v608, %v606
    %v689 = vpack.c.b16 %v611, %v609
    %v690 = vpack.c.b16 %v612, %v610
    %v691 = vpack.c.b16 %v615, %v613
    %v692 = vpack.c.b16 %v616, %v614
    %v693 = vpack.c.b16 %v619, %v617
    %v694 = vpack.c.b16 %v620, %v618
    %v695 = vpack.c.b16 %v623, %v621
    %v696 = vpack.c.b16 %v624, %v622
    %v697 = vpack.c.b16 %v627, %v625
    %v698 = vpack.c.b16 %v628, %v626
    %v699 = vpack.c.b16 %v631, %v629
    %v700 = vpack.c.b16 %v632, %v630
    %v701 = vpack.c.b16 %v635, %v633
    %v702 = vpack.c.b16 %v636, %v634
    %v703 = vpack.c.b16 %v639, %v637
    %v704 = vpack.c.b16 %v640, %v638
    %v705 = vpack.c.b16 %v643, %v641
    %v706 = vpack.c.b16 %v644, %v642
    %v707 = vpack.c.b16 %v647, %v645
    %v708 = vpack.c.b16 %v648, %v646
    %v709 = vpack.c.b16 %v651, %v649
    %v710 = vpack.c.b16 %v652, %v650
    %v711 = vpack.c.b16 %v655, %v653
    %v712 = vpack.c.b16 %v656, %v654
    %v713 = vpack.c.b16 %v659, %v657
    %v714 = vpack.c.b16 %v660, %v658
    %v715 = vpack.c.b16 %v663, %v661
    %v716 = vpack.c.b16 %v664, %v662
    %v717 = vpack.c.b16 %v667, %v665
    %v718 = vpack.c.b16 %v668, %v666
    %v719 = vpack.c.b16 %v671, %v669
    %v720 = vpack.c.b16 %v672, %v670
    %769 = vmatprep.subr.bf16.mxu0 %v674
    %770 = vmatpush1.bf16.msra.mxu0 %v673
    %771 = vmatprep.subr.bf16.mxu0 %v676
    %772 = vmatpush1.bf16.msra.mxu0 %v675
    %773 = vmatprep.subr.bf16.mxu0 %v678
    %774 = vmatpush1.bf16.msra.mxu0 %v677
    %775 = vmatprep.subr.bf16.mxu0 %v680
    %776 = vmatpush1.bf16.msra.mxu0 %v679
    %777 = vmatprep.subr.bf16.mxu0 %v682
    %778 = vmatpush1.bf16.msra.mxu0 %v681
    %779 = vmatprep.subr.bf16.mxu0 %v684
    %780 = vmatpush1.bf16.msra.mxu0 %v683
    %781 = vmatprep.subr.bf16.mxu0 %v686
    %782 = vmatpush1.bf16.msra.mxu0 %v685
    %783 = vmatprep.subr.bf16.mxu0 %v688
    %784 = vmatpush1.bf16.msra.mxu0 %v687
    %785 = vmatprep.subr.bf16.mxu0 %v690
    %786 = vmatpush1.bf16.msra.mxu0 %v689
    %787 = vmatprep.subr.bf16.mxu0 %v692
    %788 = vmatpush1.bf16.msra.mxu0 %v691
    %789 = vmatprep.subr.bf16.mxu0 %v694
    %790 = vmatpush1.bf16.msra.mxu0 %v693
    %791 = vmatprep.subr.bf16.mxu0 %v696
    %792 = vmatpush1.bf16.msra.mxu0 %v695
    %793 = vmatprep.subr.bf16.mxu0 %v698
    %794 = vmatpush1.bf16.msra.mxu0 %v697
    %795 = vmatprep.subr.bf16.mxu0 %v700
    %796 = vmatpush1.bf16.msra.mxu0 %v699
    %797 = vmatprep.subr.bf16.mxu0 %v702
    %798 = vmatpush1.bf16.msra.mxu0 %v701
    %799 = vmatprep.subr.bf16.mxu0 %v704
    %800 = vmatpush1.bf16.msra.mxu0 %v703
    %801 = vmatprep.mubr.bf16.mxu0 %v103
    %802 = vmatmul.mubr.bf16.gmra.mrb[0].mxu0 %v102
    %v803 = vpop.f32.mrb[0].mxu0
    %v804 = vadd.f32 %v523, %v803
    %v805 = vpop.f32.mrb[0].mxu0
    %v806 = vadd.f32 %v525, %v805
    %v807 = vpop.f32.mrb[0].mxu0
    %v808 = vpop.f32.mrb[0].mxu0
    %809 = vdwg.mxu0
    %810 = vmatprep.subr.bf16.mxu0 %v706
    %811 = vmatpush1.bf16.msra.mxu0 %v705
    %812 = vmatprep.subr.bf16.mxu0 %v708
    %813 = vmatpush1.bf16.msra.mxu0 %v707
    %814 = vmatprep.subr.bf16.mxu0 %v710
    %815 = vmatpush1.bf16.msra.mxu0 %v709
    %816 = vmatprep.subr.bf16.mxu0 %v712
    %817 = vmatpush1.bf16.msra.mxu0 %v711
    %818 = vmatprep.subr.bf16.mxu0 %v714
    %819 = vmatpush1.bf16.msra.mxu0 %v713
    %820 = vmatprep.subr.bf16.mxu0 %v716
    %821 = vmatpush1.bf16.msra.mxu0 %v715
    %822 = vmatprep.subr.bf16.mxu0 %v718
    %823 = vmatpush1.bf16.msra.mxu0 %v717
    %824 = vmatprep.subr.bf16.mxu0 %v720
    %825 = vmatpush1.bf16.msra.mxu0 %v719
    %826 = vmatprep.subr.bf16.mxu0 0
    %827 = vmatpush1.bf16.msra.mxu0 0
    %828 = vmatprep.subr.bf16.mxu0 0
    %829 = vmatpush1.bf16.msra.mxu0 0
    %830 = vmatprep.subr.bf16.mxu0 0
    %831 = vmatpush1.bf16.msra.mxu0 0
    %832 = vmatprep.subr.bf16.mxu0 0
    %833 = vmatpush1.bf16.msra.mxu0 0
    %834 = vmatprep.subr.bf16.mxu0 0
    %835 = vmatpush1.bf16.msra.mxu0 0
    %836 = vmatprep.subr.bf16.mxu0 0
    %837 = vmatpush1.bf16.msra.mxu0 0
    %838 = vmatprep.subr.bf16.mxu0 0
    %839 = vmatpush1.bf16.msra.mxu0 0
    %840 = vmatprep.subr.bf16.mxu0 0
    %841 = vmatpush1.bf16.msra.mxu0 0
    %842 = vmatprep.mubr.bf16.mxu0 0
    %843 = vmatmul.mubr.bf16.gmra.mrb[0].mxu0 %v104
    %v844 = vpop.f32.mrb[0].mxu0
    %v845 = vadd.f32 %v804, %v844
    %v846 = vpop.f32.mrb[0].mxu0
    %v847 = vadd.f32 %v806, %v846
    %v848 = vpop.f32.mrb[0].mxu0
    %v849 = vpop.f32.mrb[0].mxu0
    %850 = vdwg.mxu0
    %v851 = vld [vmem:[%s6] sm:$0x3]
    %v853 = vlaneseq
    %v854 = vshrl.u32 %v853, 7
    %v855 = vsub.s32 0, %v854
    %v856 = vrot.slane %v851, %v855
    %v857 = vlaneseq
    %v858 = vshrl.u32 %v857, 7
    %v859 = vsub.s32 1, %v858
    %v860 = vrot.slane %v851, %v859
    %v863 = vadd.f32 %v845, %v856
    %v864 = vadd.f32 %v847, %v860
    %v865 = vmax.f32 %v863, 0.0
    %v866 = vmax.f32 %v864, 0.0
    %v867 = vpack.c.bf16 %v865, %v865
    %v868 = vpack.c.bf16 %v866, %v866
    %v869 = vld [vmem:[#allocation11] sm:$0xf]
    %v870 = vld [vmem:[#allocation11 + $0x4] sm:$0xf]
    %v871 = vld [vmem:[#allocation11 + $0x8] sm:$0xf]
    %v872 = vld [vmem:[#allocation11 + $0xc] sm:$0xf]
    %v873 = vld [vmem:[#allocation11 + $0x10] sm:$0xf]
    %v874 = vld [vmem:[#allocation11 + $0x14] sm:$0xf]
    %v875 = vld [vmem:[#allocation11 + $0x18] sm:$0xf]
    %v876 = vld [vmem:[#allocation11 + $0x1c] sm:$0xf]
    %v877 = vld [vmem:[#allocation11 + $0x20] sm:$0xf]
    %v878 = vld [vmem:[#allocation11 + $0x24] sm:$0xf]
    %v879 = vld [vmem:[#allocation11 + $0x28] sm:$0xf]
    %v880 = vld [vmem:[#allocation11 + $0x2c] sm:$0xf]
    %v881 = vld [vmem:[#allocation11 + $0x30] sm:$0xf]
    %v882 = vld [vmem:[#allocation11 + $0x34] sm:$0xf]
    %v883 = vld [vmem:[#allocation11 + $0x38] sm:$0xf]
    %v884 = vld [vmem:[#allocation11 + $0x3c] sm:$0xf]
    %v885 = vld [vmem:[#allocation11 + $0x40] sm:$0xf]
    %v886 = vld [vmem:[#allocation11 + $0x44] sm:$0xf]
    %v887 = vld [vmem:[#allocation11 + $0x48] sm:$0xf]
    %v888 = vld [vmem:[#allocation11 + $0x4c] sm:$0xf]
    %v889 = vld [vmem:[#allocation11 + $0x50] sm:$0xf]
    %v890 = vld [vmem:[#allocation11 + $0x54] sm:$0xf]
    %v891 = vld [vmem:[#allocation11 + $0x58] sm:$0xf]
    %v892 = vld [vmem:[#allocation11 + $0x5c] sm:$0xf]
    %v893 = vld [vmem:[#allocation11 + $0x60] sm:$0xf]
    %v894 = vld [vmem:[#allocation11 + $0x64] sm:$0xf]
    %v895 = vld [vmem:[#allocation11 + $0x68] sm:$0xf]
    %v896 = vld [vmem:[#allocation11 + $0x6c] sm:$0xf]
    %v897 = vld [vmem:[#allocation11 + $0x70] sm:$0xf]
    %v898 = vld [vmem:[#allocation11 + $0x74] sm:$0xf]
    %v899 = vld [vmem:[#allocation11 + $0x78] sm:$0xf]
    %v900 = vld [vmem:[#allocation11 + $0x7c] sm:$0xf]
    %v901 = vld [vmem:[%s7] sm:$0x1]
    %v903 = vlaneseq
    %v904 = vshrl.u32 %v903, 7
    %v905 = vsub.s32 0, %v904
    %v906 = vrot.slane %v901, %v905
    %v940 = vunpack.c.l.b16 %v869
    %v941 = vunpack.c.l.b16 %v870
    %v942 = vunpack.c.l.b16 %v871
    %v943 = vunpack.c.l.b16 %v872
    %v944 = vunpack.c.l.b16 %v873
    %v945 = vunpack.c.l.b16 %v874
    %v946 = vunpack.c.l.b16 %v875
    %v947 = vunpack.c.l.b16 %v876
    %v948 = vunpack.c.l.b16 %v877
    %v949 = vunpack.c.l.b16 %v878
    %v950 = vunpack.c.l.b16 %v879
    %v951 = vunpack.c.l.b16 %v880
    %v952 = vunpack.c.l.b16 %v881
    %v953 = vunpack.c.l.b16 %v882
    %v954 = vunpack.c.l.b16 %v883
    %v955 = vunpack.c.l.b16 %v884
    %v956 = vunpack.c.l.b16 %v885
    %v957 = vunpack.c.l.b16 %v886
    %v958 = vunpack.c.l.b16 %v887
    %v959 = vunpack.c.l.b16 %v888
    %v960 = vunpack.c.l.b16 %v889
    %v961 = vunpack.c.l.b16 %v890
    %v962 = vunpack.c.l.b16 %v891
    %v963 = vunpack.c.l.b16 %v892
    %v964 = vunpack.c.l.b16 %v893
    %v965 = vunpack.c.l.b16 %v894
    %v966 = vunpack.c.l.b16 %v895
    %v967 = vunpack.c.l.b16 %v896
    %v968 = vunpack.c.l.b16 %v897
    %v969 = vunpack.c.l.b16 %v898
    %v970 = vunpack.c.l.b16 %v899
    %v971 = vunpack.c.l.b16 %v900
    %v972 = vpack.c.b16 %v941, %v940
    %v973 = vpack.c.b16 %v943, %v942
    %v974 = vpack.c.b16 %v945, %v944
    %v975 = vpack.c.b16 %v947, %v946
    %v976 = vpack.c.b16 %v949, %v948
    %v977 = vpack.c.b16 %v951, %v950
    %v978 = vpack.c.b16 %v953, %v952
    %v979 = vpack.c.b16 %v955, %v954
    %v980 = vpack.c.b16 %v957, %v956
    %v981 = vpack.c.b16 %v959, %v958
    %v982 = vpack.c.b16 %v961, %v960
    %v983 = vpack.c.b16 %v963, %v962
    %v984 = vpack.c.b16 %v965, %v964
    %v985 = vpack.c.b16 %v967, %v966
    %v986 = vpack.c.b16 %v969, %v968
    %v987 = vpack.c.b16 %v971, %v970
    %1004 = vmatprep.subr.bf16.mxu0 0
    %1005 = vmatpush1.bf16.msra.mxu0 %v972
    %1006 = vmatprep.subr.bf16.mxu0 0
    %1007 = vmatpush1.bf16.msra.mxu0 %v973
    %1008 = vmatprep.subr.bf16.mxu0 0
    %1009 = vmatpush1.bf16.msra.mxu0 %v974
    %1010 = vmatprep.subr.bf16.mxu0 0
    %1011 = vmatpush1.bf16.msra.mxu0 %v975
    %1012 = vmatprep.subr.bf16.mxu0 0
    %1013 = vmatpush1.bf16.msra.mxu0 %v976
    %1014 = vmatprep.subr.bf16.mxu0 0
    %1015 = vmatpush1.bf16.msra.mxu0 %v977
    %1016 = vmatprep.subr.bf16.mxu0 0
    %1017 = vmatpush1.bf16.msra.mxu0 %v978
    %1018 = vmatprep.subr.bf16.mxu0 0
    %1019 = vmatpush1.bf16.msra.mxu0 %v979
    %1020 = vmatprep.subr.bf16.mxu0 0
    %1021 = vmatpush1.bf16.msra.mxu0 %v980
    %1022 = vmatprep.subr.bf16.mxu0 0
    %1023 = vmatpush1.bf16.msra.mxu0 %v981
    %1024 = vmatprep.subr.bf16.mxu0 0
    %1025 = vmatpush1.bf16.msra.mxu0 %v982
    %1026 = vmatprep.subr.bf16.mxu0 0
    %1027 = vmatpush1.bf16.msra.mxu0 %v983
    %1028 = vmatprep.subr.bf16.mxu0 0
    %1029 = vmatpush1.bf16.msra.mxu0 %v984
    %1030 = vmatprep.subr.bf16.mxu0 0
    %1031 = vmatpush1.bf16.msra.mxu0 %v985
    %1032 = vmatprep.subr.bf16.mxu0 0
    %1033 = vmatpush1.bf16.msra.mxu0 %v986
    %1034 = vmatprep.subr.bf16.mxu0 0
    %1035 = vmatpush1.bf16.msra.mxu0 %v987
    %1036 = vmatprep.mubr.bf16.mxu0 %v868
    %1037 = vmatmul.mubr.bf16.gmra.mrb[0].mxu0 %v867
    %v1038 = vpop.f32.mrb[0].mxu0
    %v1039 = vadd.f32 %v906, %v1038
    %v1040 = vpop.f32.mrb[0].mxu0
    %v1041 = vpop.f32.mrb[0].mxu0
    %v1042 = vpop.f32.mrb[0].mxu0
    %1043 = vdwg.mxu0
    %v1044 = vmax.f32 %v1039, 0.0
    %v1045 = vld [vmem:[%s5] sm:$0xf]
    %v1046 = vunpack.c.l.bf16 %v1045
    %1047 = vmatprep.subr.mxu0 0.0
    %1048 = vmatpush1.xpose.msra.mxu0 %v1044
    %1049 = vmatprep.subr.mxu0 0.0
    %1050 = vmatpush1.xpose.msra.mxu0 0.0
    %1051 = vmatprep.subr.mxu0 0.0
    %1052 = vmatpush1.xpose.msra.mxu0 0.0
    %1053 = vmatprep.subr.mxu0 0.0
    %1054 = vmatpush1.xpose.msra.mxu0 0.0
    %1055 = vmatprep.subr.mxu0 0.0
    %1056 = vmatpush1.xpose.msra.mxu0 0.0
    %1057 = vmatprep.subr.mxu0 0.0
    %1058 = vmatpush1.xpose.msra.mxu0 0.0
    %1059 = vmatprep.subr.mxu0 0.0
    %1060 = vmatpush1.xpose.msra.mxu0 0.0
    %1061 = vmatprep.subr.mxu0 0.0
    %1062 = vmatpush1.xpose.msra.mxu0 0.0
    %1063 = vmatprep.subr.mxu0 0.0
    %1064 = vmatpush1.xpose.msra.mxu0 0.0
    %1065 = vmatprep.subr.mxu0 0.0
    %1066 = vmatpush1.xpose.msra.mxu0 0.0
    %1067 = vmatprep.subr.mxu0 0.0
    %1068 = vmatpush1.xpose.msra.mxu0 0.0
    %1069 = vmatprep.subr.mxu0 0.0
    %1070 = vmatpush1.xpose.msra.mxu0 0.0
    %1071 = vmatprep.subr.mxu0 0.0
    %1072 = vmatpush1.xpose.msra.mxu0 0.0
    %1073 = vmatprep.subr.mxu0 0.0
    %1074 = vmatpush1.xpose.msra.mxu0 0.0
    %1075 = vmatprep.subr.mxu0 0.0
    %1076 = vmatpush1.xpose.msra.mxu0 0.0
    %1077 = vmatprep.subr.mxu0 0.0
    %1078 = vmatpush1.xpose.msra.mxu0 0.0
    %1079 = vmatprep.subr.mxu0 0.0
    %1080 = vmatpush1.xpose.msra.mxu0 0.0
    %1081 = vmatprep.subr.mxu0 0.0
    %1082 = vmatpush1.xpose.msra.mxu0 0.0
    %1083 = vmatprep.subr.mxu0 0.0
    %1084 = vmatpush1.xpose.msra.mxu0 0.0
    %1085 = vmatprep.subr.mxu0 0.0
    %1086 = vmatpush1.xpose.msra.mxu0 0.0
    %1087 = vmatprep.subr.mxu0 0.0
    %1088 = vmatpush1.xpose.msra.mxu0 0.0
    %1089 = vmatprep.subr.mxu0 0.0
    %1090 = vmatpush1.xpose.msra.mxu0 0.0
    %1091 = vmatprep.subr.mxu0 0.0
    %1092 = vmatpush1.xpose.msra.mxu0 0.0
    %1093 = vmatprep.subr.mxu0 0.0
    %1094 = vmatpush1.xpose.msra.mxu0 0.0
    %1095 = vmatprep.subr.mxu0 0.0
    %1096 = vmatpush1.xpose.msra.mxu0 0.0
    %1097 = vmatprep.subr.mxu0 0.0
    %1098 = vmatpush1.xpose.msra.mxu0 0.0
    %1099 = vmatprep.subr.mxu0 0.0
    %1100 = vmatpush1.xpose.msra.mxu0 0.0
    %1101 = vmatprep.subr.mxu0 0.0
    %1102 = vmatpush1.xpose.msra.mxu0 0.0
    %1103 = vmatprep.subr.mxu0 0.0
    %1104 = vmatpush1.xpose.msra.mxu0 0.0
    %1105 = vmatprep.subr.mxu0 0.0
    %1106 = vmatpush1.xpose.msra.mxu0 0.0
    %1107 = vmatprep.subr.mxu0 0.0
    %1108 = vmatpush1.xpose.msra.mxu0 0.0
    %1109 = vmatprep.subr.mxu0 0.0
    %1110 = vmatpush1.xpose.msra.mxu0 0.0
    %1111 = vmatprep.mubr.f32.mxu0 0.0
    %1112 = vmatmul.mubr.f32.gmra.mrb[0].mxu0 %v1046
    %v1113 = vpop.f32.mrb[0].mxu0
    %v1114 = vadd.f32 0.0, %v1113
    %v1115 = vpop.f32.mrb[0].mxu0
    %1116 = vdwg.mxu0
    %s1117 = sld [smem:[#allocation2]]
    %v1118 = vstv %s1117
    %v1119 = vadd.f32 %v1114, %v1118
    %v1120 = vsub.f32 0.0, %v1119
    %v1121 = vmul.f32 %v1120, 1.442695
    %v1122 = vpow.pop %v1121
    %v1123 = vadd.f32 %v1122, 1.0
    %v1124 = vrcp.pop %v1123
    %vm1125 = vcmask 57344
    %1126 = vst.msk [vmem:[#allocation12] sm:$0x1] %vm1125, %v1124
    // Predicated region
    $region58: #{tpu_custom_call.1} parent=1 // pred_check
      _
    $region59: #{tpu_custom_call.1} parent=1 // pred_check_branch
      %1128 = sbr.rel (0) target = $region61
    $region60: #{tpu_custom_call.1} parent=1 // pred_region
      %s1130 = ssub.s32 16, 16
      %1131 = vsyncadd [#allocation5], %s1130
      %s1133 = sshll.u32 [#allocation12], 4
      %s1134 = int_to_ptr.vmem [resolvable:$true] %s1133
      %1136 = dma.vmem_to_hbm [thread:$0]  %s1134, 16, %s9, [#allocation5]
    $region61: #{tpu_custom_call.1} parent=1 // pred_fallthru
      _
    // Predicated region
    $region62: #{tpu_custom_call.1} parent=1 // pred_check
      _
    $region63: #{tpu_custom_call.1} parent=1 // pred_check_branch
      %1138 = sbr.rel (0) target = $region65
    $region64: #{tpu_custom_call.1} parent=1 // pred_region
      %1139 = dma.done [#allocation5], 16
    $region65: #{tpu_custom_call.1} parent=1 // pred_fallthru
      _
    %1140 = vsyncpa [#allocation4], 1
    %1141 = vsyncpa [#allocation7], 1
    %1142 = vsyncpa [#allocation10], 1
    %1143 = vsyncpa [#allocation5], 1

</llo_original>
